<compile_context>
chip_gen: v7x
topology: tpu7x:2x2x1
jax: 0.10.0
libtpu: 0.0.40
codegen_flags: <defaults>
</compile_context>

<pallas_src>
import jax
import jax.numpy as jnp
from jax import lax
from jax.experimental import pallas as pl
from jax.experimental.pallas import tpu as pltpu


def _full_sum(x):
    """Full reduction to a scalar via leading-axis adds then a 2-D reduce."""
    while x.ndim > 2:
        x = jnp.sum(x, axis=0)
    return jnp.sum(x)


# --------------------- global (CLIP contrastive) loss ------------------------


def _make_global_kernel(inv_b):
    def kernel(scale_ref, img_ref, txt_all_ref, txt_tile_ref, out_ref,
               col_m_ref, col_s_ref):
        i = pl.program_id(0)
        nb = pl.num_programs(0)

        @pl.when(i == 0)
        def _():
            out_ref[...] = jnp.zeros_like(out_ref)
            col_m_ref[...] = jnp.zeros_like(col_m_ref) - jnp.inf
            col_s_ref[...] = jnp.zeros_like(col_s_ref)

        scale = scale_ref[0]
        img = img_ref[...]              # (tm, D) image rows of this tile
        txt_all = txt_all_ref[...]      # (B, D)  all text rows (resident)
        txt_tile = txt_tile_ref[...]    # (tm, D) matching text rows (diag)

        # logits tile = scale * img @ txt.T  (contract last dims, no .T copy)
        logits = scale * lax.dot_general(
            img, txt_all, (((1,), (1,)), ((), ())),
            preferred_element_type=jnp.float32)          # (tm, B)

        # row-wise logsumexp (CE over rows of logits_per_image).
        m_row = jnp.max(logits, axis=1, keepdims=True)
        lse_row = m_row + jnp.log(
            jnp.sum(jnp.exp(logits - m_row), axis=1, keepdims=True))

        # diagonal logits computed directly: scale * <img_i, txt_i> (no eye mask).
        diag_sum = scale * jnp.sum(img * txt_tile)

        out_ref[...] = out_ref[...] + (0.5 * jnp.sum(lse_row) - diag_sum) * inv_b

        # online column logsumexp (CE over logits_per_text == logits.T rows).
        m_prev = col_m_ref[...]
        m_new = jnp.maximum(m_prev, jnp.max(logits, axis=0, keepdims=True))
        col_s_ref[...] = (col_s_ref[...] * jnp.exp(m_prev - m_new)
                          + jnp.sum(jnp.exp(logits - m_new), axis=0,
                                    keepdims=True))
        col_m_ref[...] = m_new

        @pl.when(i == nb - 1)
        def _():
            lse_col_sum = jnp.sum(col_m_ref[...] + jnp.log(col_s_ref[...]))
            out_ref[...] = out_ref[...] + (0.5 * inv_b) * lse_col_sum

    return kernel


# ----------------------------- local (SPARC) loss ----------------------------


def _make_local_kernel(inv_bt):
    def kernel(scale_ref, txt_ref, img_ref, out_ref):
        i = pl.program_id(1)

        @pl.when(i == 0)
        def _():
            out_ref[...] = jnp.zeros_like(out_ref)

        scale = scale_ref[0]
        t = txt_ref[...]                 # (bb, T, D)
        im = img_ref[...]                # (bb, P, D)
        num_patches = im.shape[1]

        # similarity btd,bpd->btp ; min-max normalize ; threshold ; weights.
        sim = jnp.einsum('btd,bpd->btp', t, im,
                         preferred_element_type=jnp.float32)
        smin = jnp.min(sim, axis=-1, keepdims=True)
        smax = jnp.max(sim, axis=-1, keepdims=True)
        sim = (sim - smin) * pl.reciprocal(smax - smin, approx=True)
        sim = jnp.where(sim < (1.0 / num_patches), 0.0, sim)
        w = sim * pl.reciprocal(jnp.sum(sim, axis=-1, keepdims=True),
                                approx=True)

        # grouped image-patch embeddings + L2 normalization (rsqrt -> EUP).
        grouped = jnp.einsum('btp,bpd->btd', w, im,
                             preferred_element_type=jnp.float32)
        gi = grouped * lax.rsqrt(
            jnp.sum(grouped * grouped, axis=-1, keepdims=True))
        gt = t * lax.rsqrt(jnp.sum(t * t, axis=-1, keepdims=True))

        # cross = scale * gt @ gi.T per example   -> (bb, T, T)
        cross = scale * jnp.einsum('btd,bsd->bts', gt, gi,
                                   preferred_element_type=jnp.float32)

        # LSE-trace identity: sum_t(2*cross[t,t] - lse_row[t] - lse_col[t]).
        diag_sum = scale * _full_sum(gt * gi)

        m_r = jnp.max(cross, axis=2, keepdims=True)
        lse_r = m_r + jnp.log(jnp.sum(jnp.exp(cross - m_r), axis=2,
                                      keepdims=True))
        m_c = jnp.max(cross, axis=1, keepdims=True)
        lse_c = m_c + jnp.log(jnp.sum(jnp.exp(cross - m_c), axis=1,
                                      keepdims=True))

        trace_sum = 2.0 * diag_sum - _full_sum(lse_r) - _full_sum(lse_c)
        out_ref[...] = out_ref[...] - trace_sum * inv_bt

    return kernel


# ----------------------------- wrapper ---------------------------------------


def _largest_divisor_at_most(n, cap):
    cap = max(1, min(n, cap))
    for cand in range(cap, 0, -1):
        if n % cand == 0:
            return cand
    return 1


def sparc_loss_pallas(image_features, text_features, image_embeddings,
                      text_embeddings, logit_scale,
                      global_lambda=1.0, local_lambda=1.0):
    image_features = image_features.astype(jnp.float32)
    text_features = text_features.astype(jnp.float32)
    image_embeddings = image_embeddings.astype(jnp.float32)
    text_embeddings = text_embeddings.astype(jnp.float32)

    B, D = image_features.shape
    _, T, _ = text_embeddings.shape
    _, P, _ = image_embeddings.shape

    scale1d = jnp.reshape(jnp.asarray(logit_scale, dtype=jnp.float32), (1,))
    smem_spec = pl.BlockSpec(memory_space=pltpu.MemorySpace.SMEM)

    # ---- global loss: row-tiled B x B contrastive cross-entropy -------------
    tm = B
    for cand in (512, 256, 128):
        if B > cand and B % cand == 0:
            tm = cand
            break
    nb = B // tm

    global_out = pl.pallas_call(
        _make_global_kernel(1.0 / B),
        out_shape=jax.ShapeDtypeStruct((1, 1), jnp.float32),
        grid=(nb,),
        in_specs=[
            smem_spec,                                   # logit_scale (SMEM)
            pl.BlockSpec((tm, D), lambda i: (i, 0)),     # image rows (tile)
            pl.BlockSpec((B, D), lambda i: (0, 0)),      # all text rows
            pl.BlockSpec((tm, D), lambda i: (i, 0)),     # text rows (diag)
        ],
        out_specs=pl.BlockSpec((1, 1), lambda i: (0, 0)),
        scratch_shapes=[
            pltpu.VMEM((1, B), jnp.float32),             # running column max
            pltpu.VMEM((1, B), jnp.float32),             # running column sumexp
        ],
        compiler_params=pltpu.CompilerParams(
            dimension_semantics=("arbitrary",)),
    )(scale1d, image_features, text_features, text_features)

    # ---- local loss: batch-blocked, optional 2-way TensorCore split ---------
    nc = 2 if B % 2 == 0 else 1          # v7x megacore split; sequential on 1-TC
    per_core = B // nc
    # per-example f32 footprint (inputs + main temporaries); cap block ~2 MiB.
    per_example_bytes = 4 * (2 * T * D + P * D + T * P + 2 * T * T)
    bb = _largest_divisor_at_most(
        per_core, (2 * 1024 * 1024) // max(per_example_bytes, 1))
    ni = per_core // bb

    local_out = pl.pallas_call(
        _make_local_kernel(1.0 / (B * T)),
        out_shape=jax.ShapeDtypeStruct((nc, 8, 128), jnp.float32),
        grid=(nc, ni),
        in_specs=[
            smem_spec,                                                   # scale
            pl.BlockSpec((bb, T, D), lambda c, i: (c * ni + i, 0, 0)),   # text
            pl.BlockSpec((bb, P, D), lambda c, i: (c * ni + i, 0, 0)),   # image
        ],
        out_specs=pl.BlockSpec((1, 8, 128), lambda c, i: (c, 0, 0)),
        compiler_params=pltpu.CompilerParams(
            dimension_semantics=("parallel", "arbitrary")),
    )(scale1d, text_embeddings, image_embeddings)

    local_loss = jnp.sum(local_out[:, 0, 0])
    global_loss = global_out[0, 0]
    return global_lambda * global_loss + local_lambda * local_loss


# ----------------------------- reference (pure JAX) --------------------------


def sparc_loss_ref(image_features, text_features, image_embeddings,
                   text_embeddings, logit_scale,
                   global_lambda=1.0, local_lambda=1.0):
    logits_i = logit_scale * image_features @ text_features.T
    logits_t = logit_scale * text_features @ image_features.T
    B = logits_i.shape[0]
    labels = jnp.arange(B)

    def ce(logits):
        lse = jax.scipy.special.logsumexp(logits, axis=1)
        return jnp.mean(lse - logits[jnp.arange(B), labels])

    global_loss = (ce(logits_i) + ce(logits_t)) / 2

    sim = jnp.einsum('btd,bpd->btp', text_embeddings, image_embeddings)
    smin = jnp.min(sim, axis=-1, keepdims=True)
    smax = jnp.max(sim, axis=-1, keepdims=True)
    sim = (sim - smin) / (smax - smin)
    sim = jnp.where(sim < 1.0 / sim.shape[-1], 0.0, sim)
    w = sim / jnp.sum(sim, axis=-1, keepdims=True)
    grouped = jnp.einsum('btp,bpd->btd', w, image_embeddings)
    li = grouped / jnp.linalg.norm(grouped, axis=-1, keepdims=True)
    lt = text_embeddings / jnp.linalg.norm(text_embeddings, axis=-1, keepdims=True)
    cross = jnp.einsum('btd,bpd->btp', lt, li) * logit_scale
    pair = jnp.log(jax.nn.softmax(cross, axis=1)) + jnp.log(jax.nn.softmax(cross, axis=2))
    T = cross.shape[1]
    trace = jnp.einsum('btt->b', pair)
    local_loss = -1.0 / pair.shape[0] * jnp.sum(trace / T)
    return global_lambda * global_loss + local_lambda * local_loss


# ----------------------------- main ------------------------------------------


if __name__ == "__main__":
    B, T, P, D = 2, 8, 16, 32
    key = jax.random.PRNGKey(0)
    k1, k2, k3, k4 = jax.random.split(key, 4)

    image_features = jax.random.normal(k1, (B, D), dtype=jnp.float32)
    text_features = jax.random.normal(k2, (B, D), dtype=jnp.float32)
    # global features are L2-normalized as in CLIP usage
    image_features = image_features / jnp.linalg.norm(image_features, axis=-1, keepdims=True)
    text_features = text_features / jnp.linalg.norm(text_features, axis=-1, keepdims=True)

    image_embeddings = jax.random.normal(k3, (B, P, D), dtype=jnp.float32)
    text_embeddings = jax.random.normal(k4, (B, T, D), dtype=jnp.float32)
    logit_scale = jnp.float32(10.0)

    out = sparc_loss_pallas(image_features, text_features,
                            image_embeddings, text_embeddings, logit_scale)
    out = jax.block_until_ready(out)

    ref = sparc_loss_ref(image_features, text_features,
                         image_embeddings, text_embeddings, logit_scale)
    assert jnp.allclose(out, ref, rtol=1e-2, atol=1e-2), (out, ref)

    print("KERNEL_OK")
</pallas_src>

<mosaic_0001>
module attributes {stable_mosaic.version = 11 : i64} {
  func.func @kernel(%arg0: i32, %arg1: memref<1xf32, #tpu.memory_space<smem>>, %arg2: memref<2x32xf32, #tpu.memory_space<vmem>>, %arg3: memref<2x32xf32, #tpu.memory_space<vmem>>, %arg4: memref<2x32xf32, #tpu.memory_space<vmem>>, %arg5: memref<1x1xf32, #tpu.memory_space<vmem>>, %arg6: memref<1x2xf32, #tpu.memory_space<vmem>>, %arg7: memref<1x2xf32, #tpu.memory_space<vmem>>) attributes {dimension_semantics = [#tpu.dimension_semantics<arbitrary>], iteration_bounds = array<i64: 1>, scalar_prefetch = 0 : i64, scratch_operands = 2 : i64, tpu.core_type = #tpu.core_type<tc>, window_params = [{transform_indices = @transform_0, window_bounds = array<i64: 1>}, {transform_indices = @transform_1, window_bounds = array<i64: 2, 32>}, {pipeline_mode = #tpu.pipeline_mode<synchronous>, transform_indices = @transform_2, window_bounds = array<i64: 2, 32>}, {transform_indices = @transform_3, window_bounds = array<i64: 2, 32>}, {pipeline_mode = #tpu.pipeline_mode<synchronous>, transform_indices = @transform_4, window_bounds = array<i64: 1, 1>}]} {
    %c0_i32 = arith.constant 0 : i32
    %0 = arith.cmpi eq, %arg0, %c0_i32 : i32
    %1 = arith.extui %0 : i1 to i32
    %c0_i32_0 = arith.constant 0 : i32
    %2 = arith.cmpi ne, %1, %c0_i32_0 : i32
    scf.if %2 {
      %cst_29 = arith.constant 0.000000e+00 : f32
      %55 = vector.broadcast %cst_29 : f32 to vector<1x1xf32>
      %c0_30 = arith.constant 0 : index
      %c0_31 = arith.constant 0 : index
      %56 = vector.load %arg5[%c0_30, %c0_31] : memref<1x1xf32, #tpu.memory_space<vmem>>, vector<1x1xf32>
      tpu.vector_store %arg5[%c0_30, %c0_31], %55 {strides = array<i32>} : memref<1x1xf32, #tpu.memory_space<vmem>>, vector<1x1xf32>,
      %cst_32 = arith.constant 0.000000e+00 : f32
      %57 = vector.broadcast %cst_32 : f32 to vector<1x2xf32>
      %cst_33 = arith.constant 0x7F800000 : f32
      %58 = vector.broadcast %cst_33 : f32 to vector<1x2xf32>
      %59 = arith.subf %57, %58 : vector<1x2xf32>
      %c0_34 = arith.constant 0 : index
      %c0_35 = arith.constant 0 : index
      %60 = vector.load %arg6[%c0_34, %c0_35] : memref<1x2xf32, #tpu.memory_space<vmem>>, vector<1x2xf32>
      tpu.vector_store %arg6[%c0_34, %c0_35], %59 {strides = array<i32>} : memref<1x2xf32, #tpu.memory_space<vmem>>, vector<1x2xf32>,
      %cst_36 = arith.constant 0.000000e+00 : f32
      %61 = vector.broadcast %cst_36 : f32 to vector<1x2xf32>
      %c0_37 = arith.constant 0 : index
      %c0_38 = arith.constant 0 : index
      %62 = vector.load %arg7[%c0_37, %c0_38] : memref<1x2xf32, #tpu.memory_space<vmem>>, vector<1x2xf32>
      tpu.vector_store %arg7[%c0_37, %c0_38], %61 {strides = array<i32>} : memref<1x2xf32, #tpu.memory_space<vmem>>, vector<1x2xf32>,
    } else {
    }
    %c0 = arith.constant 0 : index
    %3 = memref.load %arg1[%c0] : memref<1xf32, #tpu.memory_space<smem>>
    %c0_1 = arith.constant 0 : index
    %c0_2 = arith.constant 0 : index
    %4 = vector.load %arg2[%c0_1, %c0_2] : memref<2x32xf32, #tpu.memory_space<vmem>>, vector<2x32xf32>
    %c0_3 = arith.constant 0 : index
    %c0_4 = arith.constant 0 : index
    %5 = vector.load %arg3[%c0_3, %c0_4] : memref<2x32xf32, #tpu.memory_space<vmem>>, vector<2x32xf32>
    %c0_5 = arith.constant 0 : index
    %c0_6 = arith.constant 0 : index
    %6 = vector.load %arg4[%c0_5, %c0_6] : memref<2x32xf32, #tpu.memory_space<vmem>>, vector<2x32xf32>
    %cst = arith.constant dense<0.000000e+00> : vector<2x2xf32>
    %7 = tpu.matmul %4, %5, %cst {dimension_numbers = #tpu.dot_dimension_numbers<[1], [1], [0], [0], [0, 0, 1, 0], [], []>} : vector<2x32xf32>, vector<2x32xf32>, vector<2x2xf32> -> vector<2x2xf32>
    %8 = vector.broadcast %3 : f32 to vector<2x2xf32>
    %9 = arith.mulf %8, %7 : vector<2x2xf32>
    %cst_7 = arith.constant dense<0xFF800000> : vector<2xf32>
    %10 = vector.multi_reduction <maximumf>, %9, %cst_7 [1] : vector<2x2xf32> to vector<2xf32>
    %11 = vector.shape_cast %10 : vector<2xf32> to vector<2x1xf32>
    %12 = vector.broadcast %11 : vector<2x1xf32> to vector<2x2xf32>
    %13 = arith.subf %9, %12 : vector<2x2xf32>
    %14 = math.exp %13 : vector<2x2xf32>
    %cst_8 = arith.constant dense<0.000000e+00> : vector<2xf32>
    %15 = vector.multi_reduction <add>, %14, %cst_8 [1] : vector<2x2xf32> to vector<2xf32>
    %16 = vector.shape_cast %15 : vector<2xf32> to vector<2x1xf32>
    %17 = math.log %16 : vector<2x1xf32>
    %18 = arith.addf %11, %17 : vector<2x1xf32>
    %19 = arith.mulf %4, %6 : vector<2x32xf32>
    %20 = vector.shape_cast %19 : vector<2x32xf32> to vector<1x2x32xf32>
    %cst_9 = arith.constant dense<0.000000e+00> : vector<1xf32>
    %21 = vector.multi_reduction <add>, %20, %cst_9 [1, 2] : vector<1x2x32xf32> to vector<1xf32>
    %22 = vector.shape_cast %21 : vector<1xf32> to vector<1x1x1xf32>
    %23 = vector.extract %22[0, 0, 0] : f32 from vector<1x1x1xf32>
    %24 = arith.mulf %3, %23 : f32
    %c0_10 = arith.constant 0 : index
    %c0_11 = arith.constant 0 : index
    %25 = vector.load %arg5[%c0_10, %c0_11] : memref<1x1xf32, #tpu.memory_space<vmem>>, vector<1x1xf32>
    %26 = vector.shape_cast %18 : vector<2x1xf32> to vector<1x2x1xf32>
    %cst_12 = arith.constant dense<0.000000e+00> : vector<1xf32>
    %27 = vector.multi_reduction <add>, %26, %cst_12 [1, 2] : vector<1x2x1xf32> to vector<1xf32>
    %28 = vector.shape_cast %27 : vector<1xf32> to vector<1x1x1xf32>
    %29 = vector.extract %28[0, 0, 0] : f32 from vector<1x1x1xf32>
    %cst_13 = arith.constant 5.000000e-01 : f32
    %30 = arith.mulf %cst_13, %29 : f32
    %31 = arith.subf %30, %24 : f32
    %cst_14 = arith.constant 5.000000e-01 : f32
    %32 = arith.mulf %31, %cst_14 : f32
    %33 = vector.broadcast %32 : f32 to vector<1x1xf32>
    %34 = arith.addf %25, %33 : vector<1x1xf32>
    %c0_15 = arith.constant 0 : index
    %c0_16 = arith.constant 0 : index
    %35 = vector.load %arg5[%c0_15, %c0_16] : memref<1x1xf32, #tpu.memory_space<vmem>>, vector<1x1xf32>
    tpu.vector_store %arg5[%c0_15, %c0_16], %34 {strides = array<i32>} : memref<1x1xf32, #tpu.memory_space<vmem>>, vector<1x1xf32>,
    %c0_17 = arith.constant 0 : index
    %c0_18 = arith.constant 0 : index
    %36 = vector.load %arg6[%c0_17, %c0_18] : memref<1x2xf32, #tpu.memory_space<vmem>>, vector<1x2xf32>
    %cst_19 = arith.constant dense<0xFF800000> : vector<2xf32>
    %37 = vector.multi_reduction <maximumf>, %9, %cst_19 [0] : vector<2x2xf32> to vector<2xf32>
    %38 = vector.shape_cast %37 : vector<2xf32> to vector<1x2xf32>
    %39 = arith.maximumf %36, %38 : vector<1x2xf32>
    %c0_20 = arith.constant 0 : index
    %c0_21 = arith.constant 0 : index
    %40 = vector.load %arg7[%c0_20, %c0_21] : memref<1x2xf32, #tpu.memory_space<vmem>>, vector<1x2xf32>
    %41 = arith.subf %36, %39 : vector<1x2xf32>
    %42 = math.exp %41 : vector<1x2xf32>
    %43 = arith.mulf %40, %42 : vector<1x2xf32>
    %44 = vector.broadcast %39 : vector<1x2xf32> to vector<2x2xf32>
    %45 = arith.subf %9, %44 : vector<2x2xf32>
    %46 = math.exp %45 : vector<2x2xf32>
    %cst_22 = arith.constant dense<0.000000e+00> : vector<2xf32>
    %47 = vector.multi_reduction <add>, %46, %cst_22 [0] : vector<2x2xf32> to vector<2xf32>
    %48 = vector.shape_cast %47 : vector<2xf32> to vector<1x2xf32>
    %49 = arith.addf %43, %48 : vector<1x2xf32>
    %c0_23 = arith.constant 0 : index
    %c0_24 = arith.constant 0 : index
    %50 = vector.load %arg7[%c0_23, %c0_24] : memref<1x2xf32, #tpu.memory_space<vmem>>, vector<1x2xf32>
    tpu.vector_store %arg7[%c0_23, %c0_24], %49 {strides = array<i32>} : memref<1x2xf32, #tpu.memory_space<vmem>>, vector<1x2xf32>,
    %c0_25 = arith.constant 0 : index
    %c0_26 = arith.constant 0 : index
    %51 = vector.load %arg6[%c0_25, %c0_26] : memref<1x2xf32, #tpu.memory_space<vmem>>, vector<1x2xf32>
    tpu.vector_store %arg6[%c0_25, %c0_26], %39 {strides = array<i32>} : memref<1x2xf32, #tpu.memory_space<vmem>>, vector<1x2xf32>,
    %c0_i32_27 = arith.constant 0 : i32
    %52 = arith.cmpi eq, %arg0, %c0_i32_27 : i32
    %53 = arith.extui %52 : i1 to i32
    %c0_i32_28 = arith.constant 0 : i32
    %54 = arith.cmpi ne, %53, %c0_i32_28 : i32
    scf.if %54 {
      %c0_29 = arith.constant 0 : index
      %c0_30 = arith.constant 0 : index
      %55 = vector.load %arg6[%c0_29, %c0_30] : memref<1x2xf32, #tpu.memory_space<vmem>>, vector<1x2xf32>
      %c0_31 = arith.constant 0 : index
      %c0_32 = arith.constant 0 : index
      %56 = vector.load %arg7[%c0_31, %c0_32] : memref<1x2xf32, #tpu.memory_space<vmem>>, vector<1x2xf32>
      %57 = math.log %56 : vector<1x2xf32>
      %58 = arith.addf %55, %57 : vector<1x2xf32>
      %59 = vector.shape_cast %58 : vector<1x2xf32> to vector<1x1x2xf32>
      %cst_33 = arith.constant dense<0.000000e+00> : vector<1xf32>
      %60 = vector.multi_reduction <add>, %59, %cst_33 [1, 2] : vector<1x1x2xf32> to vector<1xf32>
      %61 = vector.shape_cast %60 : vector<1xf32> to vector<1x1x1xf32>
      %62 = vector.extract %61[0, 0, 0] : f32 from vector<1x1x1xf32>
      %c0_34 = arith.constant 0 : index
      %c0_35 = arith.constant 0 : index
      %63 = vector.load %arg5[%c0_34, %c0_35] : memref<1x1xf32, #tpu.memory_space<vmem>>, vector<1x1xf32>
      %cst_36 = arith.constant 2.500000e-01 : f32
      %64 = arith.mulf %cst_36, %62 : f32
      %65 = vector.broadcast %64 : f32 to vector<1x1xf32>
      %66 = arith.addf %63, %65 : vector<1x1xf32>
      %c0_37 = arith.constant 0 : index
      %c0_38 = arith.constant 0 : index
      %67 = vector.load %arg5[%c0_37, %c0_38] : memref<1x1xf32, #tpu.memory_space<vmem>>, vector<1x1xf32>
      tpu.vector_store %arg5[%c0_37, %c0_38], %66 {strides = array<i32>} : memref<1x1xf32, #tpu.memory_space<vmem>>, vector<1x1xf32>,
    } else {
    }
    return
  }
  func.func @transform_0(%arg0: i32) -> i32 {
    %c0_i32 = arith.constant 0 : i32
    %c0_i32_0 = arith.constant 0 : i32
    return %c0_i32 : i32
  }
  func.func @transform_1(%arg0: i32) -> (i32, i32) {
    %c0_i32 = arith.constant 0 : i32
    %c0_i32_0 = arith.constant 0 : i32
    return %arg0, %c0_i32 : i32, i32
  }
  func.func @transform_2(%arg0: i32) -> (i32, i32) {
    %c0_i32 = arith.constant 0 : i32
    %c0_i32_0 = arith.constant 0 : i32
    %c0_i32_1 = arith.constant 0 : i32
    return %c0_i32, %c0_i32_0 : i32, i32
  }
  func.func @transform_3(%arg0: i32) -> (i32, i32) {
    %c0_i32 = arith.constant 0 : i32
    %c0_i32_0 = arith.constant 0 : i32
    return %arg0, %c0_i32 : i32, i32
  }
  func.func @transform_4(%arg0: i32) -> (i32, i32) {
    %c0_i32 = arith.constant 0 : i32
    %c0_i32_0 = arith.constant 0 : i32
    %c0_i32_1 = arith.constant 0 : i32
    return %c0_i32, %c0_i32_0 : i32, i32
  }
}

</mosaic_0001>

<llo_original>
// kernel: tpu_custom_call.1
$region0: #{tpu_custom_call.1}
  #allocation0 [shape = 'u32[]', space=smem, size = 0x4, offset = 0x4, fixed_abs, tag = 'smem constant byte address 0x4 - core index']
  #allocation1 [shape = 'u32[144,128]{1,0:T(1,128)}', space=vmem, size = 0x12000, scoped, tag = 'internal scratch']
  #allocation2 [shape = 'f32[1,2]{1,0:T(1,128)}', space=vmem, size = 0x200, scoped, tag = 'scratch operand']
  #allocation3 [shape = 'f32[1,2]{1,0:T(1,128)}', space=vmem, size = 0x200, scoped, tag = 'scratch operand']
  #allocation4 [shape = 'f32[1]{0:T(128)S(6)}', space=smem, size = 0x200, scoped, tag = 'scoped memory for tpu_custom_call.1']
  %s0 = inlined_call_operand.<no memory space> [shape: f32[1], index: 0, kind: input, shape index: {}]
  %s1 = inlined_call_operand.vmem [shape: f32[2,32], index: 1, kind: input, shape index: {}]
  %s2 = inlined_call_operand.vmem [shape: f32[2,32], index: 2, kind: input, shape index: {}]
  %s3 = inlined_call_operand.vmem [shape: f32[2,32], index: 3, kind: input, shape index: {}]
  %s4 = inlined_call_operand.hbm [shape: f32[1,1], index: 4, kind: output, shape index: {}]
  %s5 = sld [smem:[#allocation0]]
  $region34: #{tpu_custom_call.1} parent=0
    _
  %s7 = ssub.s32 1, %s5
  %s8 = scalar_select 0, %s7, %s5
  %9 = sst [smem:[#allocation4]] %s0
  $region1: #{tpu_custom_call.1} parent=0
    #allocation5 [shape = 'u8[512]{0}', space=vmem, size = 0x400, scoped, tag = 'output window, operand 0, single buffered']
    #allocation6 [shape = 's32[1]{0}', space=sflag, size = 0x4, scoped, tag = 'scoped memory for tpu_custom_call.1']
    %10 = vsyncpa [#allocation6], 0
    // Predicated region
    $region2: #{tpu_custom_call.1} parent=1 // pred_check
      _
    $region3: #{tpu_custom_call.1} parent=1 // pred_check_branch
      %12 = sbr.rel (0) target = $region5
    $region4: #{tpu_custom_call.1} parent=1 // pred_region
      _
    $region5: #{tpu_custom_call.1} parent=1 // pred_fallthru
      _
    // Predicated region
    $region6: #{tpu_custom_call.1} parent=1 // pred_check
      _
    $region7: #{tpu_custom_call.1} parent=1 // pred_check_branch
      %14 = sbr.rel (0) target = $region9
    $region8: #{tpu_custom_call.1} parent=1 // pred_region
      _
    $region9: #{tpu_custom_call.1} parent=1 // pred_fallthru
      _
    // Predicated region
    $region10: #{tpu_custom_call.1} parent=1 // pred_check
      _
    $region11: #{tpu_custom_call.1} parent=1 // pred_check_branch
      %16 = sbr.rel (0) target = $region13
    $region12: #{tpu_custom_call.1} parent=1 // pred_region
      _
    $region13: #{tpu_custom_call.1} parent=1 // pred_fallthru
      _
    // Predicated region
    $region14: #{tpu_custom_call.1} parent=1 // pred_check
      _
    $region15: #{tpu_custom_call.1} parent=1 // pred_check_branch
      %18 = sbr.rel (0) target = $region17
    $region16: #{tpu_custom_call.1} parent=1 // pred_region
      _
    $region17: #{tpu_custom_call.1} parent=1 // pred_fallthru
      _
    %p19 = scmp.eq.s32.totalorder 0, 0
    // Predicated region
    $region18: #{tpu_custom_call.1} parent=1 // pred_check
      %p20 = pneg %p19
    $region19: #{tpu_custom_call.1} parent=1 // pred_check_branch
      %22 = sbr.rel (%p20) target = $region21
    $region20: #{tpu_custom_call.1} parent=1 // pred_region
      %vm23 = vcmask 0
      %24 = vst.msk [vmem:[#allocation5] sm:$0x1] %vm23, 0.0
      %vm25 = vcmask 8192
      %26 = vst.msk [vmem:[#allocation2] sm:$0x1] %vm25, -inf
      %27 = vst.msk [vmem:[#allocation3] sm:$0x1] %vm25, 0.0
    $region21: #{tpu_custom_call.1} parent=1 // pred_fallthru
      _
    %s28 = sld [smem:[#allocation4]]
    %v29 = vld [vmem:[%s1] sm:$0x3]
    %v30 = vld [vmem:[%s2] sm:$0x3]
    %v31 = vld [vmem:[%s3] sm:$0x3]
    %vm32 = vcmask 261120
    %v34 = vsel %vm32, %v29, 0
    %v37 = vsel %vm32, %v30, 0
    %39 = vmatprep.subr.mxu0 0.0
    %40 = vmatpush1.xpose.msra.mxu0 %v37
    %41 = vmatprep.subr.mxu0 0.0
    %42 = vmatpush1.xpose.msra.mxu0 0.0
    %43 = vmatprep.subr.mxu0 0.0
    %44 = vmatpush1.xpose.msra.mxu0 0.0
    %45 = vmatprep.subr.mxu0 0.0
    %46 = vmatpush1.xpose.msra.mxu0 0.0
    %47 = vmatprep.subr.mxu0 0.0
    %48 = vmatpush1.xpose.msra.mxu0 0.0
    %49 = vmatprep.subr.mxu0 0.0
    %50 = vmatpush1.xpose.msra.mxu0 0.0
    %51 = vmatprep.subr.mxu0 0.0
    %52 = vmatpush1.xpose.msra.mxu0 0.0
    %53 = vmatprep.subr.mxu0 0.0
    %54 = vmatpush1.xpose.msra.mxu0 0.0
    %55 = vmatprep.subr.mxu0 0.0
    %56 = vmatpush1.xpose.msra.mxu0 0.0
    %57 = vmatprep.subr.mxu0 0.0
    %58 = vmatpush1.xpose.msra.mxu0 0.0
    %59 = vmatprep.subr.mxu0 0.0
    %60 = vmatpush1.xpose.msra.mxu0 0.0
    %61 = vmatprep.subr.mxu0 0.0
    %62 = vmatpush1.xpose.msra.mxu0 0.0
    %63 = vmatprep.subr.mxu0 0.0
    %64 = vmatpush1.xpose.msra.mxu0 0.0
    %65 = vmatprep.subr.mxu0 0.0
    %66 = vmatpush1.xpose.msra.mxu0 0.0
    %67 = vmatprep.subr.mxu0 0.0
    %68 = vmatpush1.xpose.msra.mxu0 0.0
    %69 = vmatprep.subr.mxu0 0.0
    %70 = vmatpush1.xpose.msra.mxu0 0.0
    %71 = vmatprep.subr.mxu0 0.0
    %72 = vmatpush1.xpose.msra.mxu0 0.0
    %73 = vmatprep.subr.mxu0 0.0
    %74 = vmatpush1.xpose.msra.mxu0 0.0
    %75 = vmatprep.subr.mxu0 0.0
    %76 = vmatpush1.xpose.msra.mxu0 0.0
    %77 = vmatprep.subr.mxu0 0.0
    %78 = vmatpush1.xpose.msra.mxu0 0.0
    %79 = vmatprep.subr.mxu0 0.0
    %80 = vmatpush1.xpose.msra.mxu0 0.0
    %81 = vmatprep.subr.mxu0 0.0
    %82 = vmatpush1.xpose.msra.mxu0 0.0
    %83 = vmatprep.subr.mxu0 0.0
    %84 = vmatpush1.xpose.msra.mxu0 0.0
    %85 = vmatprep.subr.mxu0 0.0
    %86 = vmatpush1.xpose.msra.mxu0 0.0
    %87 = vmatprep.subr.mxu0 0.0
    %88 = vmatpush1.xpose.msra.mxu0 0.0
    %89 = vmatprep.subr.mxu0 0.0
    %90 = vmatpush1.xpose.msra.mxu0 0.0
    %91 = vmatprep.subr.mxu0 0.0
    %92 = vmatpush1.xpose.msra.mxu0 0.0
    %93 = vmatprep.subr.mxu0 0.0
    %94 = vmatpush1.xpose.msra.mxu0 0.0
    %95 = vmatprep.subr.mxu0 0.0
    %96 = vmatpush1.xpose.msra.mxu0 0.0
    %97 = vmatprep.subr.mxu0 0.0
    %98 = vmatpush1.xpose.msra.mxu0 0.0
    %99 = vmatprep.subr.mxu0 0.0
    %100 = vmatpush1.xpose.msra.mxu0 0.0
    %101 = vmatprep.subr.mxu0 0.0
    %102 = vmatpush1.xpose.msra.mxu0 0.0
    %103 = vmatprep.mubr.f32.mxu0 0.0
    %104 = vmatmul.mubr.f32.gmra.mrb[0].mxu0 %v34
    %v105 = vpop.f32.mrb[0].mxu0
    %v106 = vadd.f32 0.0, %v105
    %v107 = vpop.f32.mrb[0].mxu0
    %108 = vdwg.mxu0
    %v109 = vstv %s28
    %v110 = vmul.f32 %v109, %v106
    %vm111 = vcmask 9216
    %v112 = vsel %vm111, %v110, -inf
    %113 = vmax.xlane.f32.xlu0 %v112
    %v114 = vpop.xlane.xlu0 %113
    %v115 = vsub.f32 %v110, %v114
    %v116 = vmul.f32 %v115, 1.442695
    %v117 = vpow.pop %v116
    %v118 = vsel %vm111, %v117, 0.0
    %119 = vadd.xlane.f32.xlu0 %v118
    %v120 = vpop.xlane.xlu0 %119
    %v121 = vlog2.pop %v120
    %v122 = vmul.f32 %v121, 0.6931472
    %v123 = vadd.f32 %v114, %v122
    %v124 = vmul.f32 %v29, %v31
    %vm125 = vcmask 254976
    %v126 = vsel %vm125, %v124, 0.0
    %127 = vadd.xlane.f32.xlu0 %v126
    %v128 = vpop.xlane.xlu0 %127
    %v129 = vrot.slane %v128, 4
    %v130 = vadd.f32 %v128, %v129
    %v131 = vrot.slane %v130, 2
    %v132 = vadd.f32 %v130, %v131
    %v133 = vrot.slane %v132, 1
    %v134 = vadd.f32 %v132, %v133
    %s135 = vtos %v134
    %s136 = smul.f32 %s28, %s135
    %v137 = vld [vmem:[#allocation5] sm:$0x1]
    %vm138 = vcmask 1024
    %v139 = vsel %vm138, %v123, 0.0
    %140 = vadd.xlane.f32.xlu0 %v139
    %v141 = vpop.xlane.xlu0 %140
    %v142 = vrot.slane %v141, 4
    %v143 = vadd.f32 %v141, %v142
    %v144 = vrot.slane %v143, 2
    %v145 = vadd.f32 %v143, %v144
    %v146 = vrot.slane %v145, 1
    %v147 = vadd.f32 %v145, %v146
    %s148 = vtos %v147
    %s149 = smul.f32 %s148, 0.5
    %s150 = ssub.f32 %s149, %s136
    %s151 = smul.f32 %s150, 0.5
    %v152 = vstv %s151
    %v153 = vadd.f32 %v137, %v152
    %vm154 = vcmask 0
    %155 = vst.msk [vmem:[#allocation5] sm:$0x1] %vm154, %v153
    %v156 = vld [vmem:[#allocation2] sm:$0x1]
    %v157 = vrot.slane %v112, 4
    %v158 = vmax.f32 %v112, %v157
    %v159 = vrot.slane %v158, 2
    %v160 = vmax.f32 %v158, %v159
    %v161 = vrot.slane %v160, 1
    %v162 = vmax.f32 %v160, %v161
    %v163 = vmax.f32 %v156, %v162
    %v164 = vld [vmem:[#allocation3] sm:$0x1]
    %v165 = vsub.f32 %v156, %v163
    %v166 = vmul.f32 %v165, 1.442695
    %v167 = vpow.pop %v166
    %v168 = vmul.f32 %v164, %v167
    %v170 = vlaneseq
    %v171 = vshrl.u32 %v170, 7
    %v172 = vsub.s32 0, %v171
    %v173 = vrot.slane %v163, %v172
    %v175 = vsub.f32 %v110, %v173
    %v176 = vmul.f32 %v175, 1.442695
    %v177 = vpow.pop %v176
    %v178 = vsel %vm111, %v177, 0.0
    %v179 = vrot.slane %v178, 4
    %v180 = vadd.f32 %v178, %v179
    %v181 = vrot.slane %v180, 2
    %v182 = vadd.f32 %v180, %v181
    %v183 = vrot.slane %v182, 1
    %v184 = vadd.f32 %v182, %v183
    %v185 = vadd.f32 %v168, %v184
    %vm186 = vcmask 8192
    %187 = vst.msk [vmem:[#allocation3] sm:$0x1] %vm186, %v185
    %188 = vst.msk [vmem:[#allocation2] sm:$0x1] %vm186, %v163
    // Predicated region
    $region22: #{tpu_custom_call.1} parent=1 // pred_check
      %p189 = pneg %p19
    $region23: #{tpu_custom_call.1} parent=1 // pred_check_branch
      %191 = sbr.rel (%p189) target = $region25
    $region24: #{tpu_custom_call.1} parent=1 // pred_region
      %v192 = vld [vmem:[#allocation2] sm:$0x1]
      %v193 = vld [vmem:[#allocation3] sm:$0x1]
      %v194 = vlog2.pop %v193
      %v195 = vmul.f32 %v194, 0.6931472
      %v196 = vadd.f32 %v192, %v195
      %v197 = vsel %vm186, %v196, 0.0
      %198 = vadd.xlane.f32.xlu0 %v197
      %v199 = vpop.xlane.xlu0 %198
      %v200 = vrot.slane %v199, 4
      %v201 = vadd.f32 %v199, %v200
      %v202 = vrot.slane %v201, 2
      %v203 = vadd.f32 %v201, %v202
      %v204 = vrot.slane %v203, 1
      %v205 = vadd.f32 %v203, %v204
      %s206 = vtos %v205
      %v207 = vld [vmem:[#allocation5] sm:$0x1]
      %s208 = smul.f32 %s206, 0.25
      %v209 = vstv %s208
      %v210 = vadd.f32 %v207, %v209
      %211 = vst.msk [vmem:[#allocation5] sm:$0x1] %vm154, %v210
    $region25: #{tpu_custom_call.1} parent=1 // pred_fallthru
      _
    // Predicated region
    $region26: #{tpu_custom_call.1} parent=1 // pred_check
      _
    $region27: #{tpu_custom_call.1} parent=1 // pred_check_branch
      %213 = sbr.rel (0) target = $region29
    $region28: #{tpu_custom_call.1} parent=1 // pred_region
      %s215 = ssub.s32 16, 16
      %216 = vsyncadd [#allocation6], %s215
      %s218 = sshll.u32 [#allocation5], 4
      %s219 = int_to_ptr.vmem [resolvable:$true] %s218
      %221 = dma.vmem_to_hbm [thread:$0]  %s219, 16, %s4, [#allocation6]
    $region29: #{tpu_custom_call.1} parent=1 // pred_fallthru
      _
    // Predicated region
    $region30: #{tpu_custom_call.1} parent=1 // pred_check
      _
    $region31: #{tpu_custom_call.1} parent=1 // pred_check_branch
      %223 = sbr.rel (0) target = $region33
    $region32: #{tpu_custom_call.1} parent=1 // pred_region
      %224 = dma.done [#allocation6], 16
    $region33: #{tpu_custom_call.1} parent=1 // pred_fallthru
      _
    %225 = vsyncpa [#allocation6], 1

</llo_original>
